<compile_context>
chip_gen: v7x
topology: tpu7x:2x2x1
jax: 0.10.0
libtpu: 0.0.40
codegen_flags: <defaults>
</compile_context>

<pallas_src>
import functools

import jax
import jax.numpy as jnp
from jax.experimental import pallas as pl
from jax.experimental.pallas import tpu as pltpu

STATE_SIZE = 4
HIDDEN_SIZE = 16
ACTION_SIZE = 2


def qnetwork_kernel(x_ref, w1_ref, b1_ref, w2_ref, b2_ref, out_ref):
    # x_ref:  (STATE_SIZE, TB)        -- batch tile on the lane axis
    # w1_ref: (STATE_SIZE, HIDDEN_SIZE, 1)   per-input-feature columns of fc1
    # b1_ref: (HIDDEN_SIZE, 1)
    # w2_ref: (HIDDEN_SIZE, ACTION_SIZE, 1)  per-hidden-feature columns of fc2
    # b2_ref: (ACTION_SIZE, 1)
    # out_ref:(ACTION_SIZE, TB)
    x = x_ref[...]                                        # (STATE_SIZE, TB) f32
    tb = x.shape[-1]

    # fc1 + ReLU: bias folded into the accumulator init, unrolled K=4 FMA chain
    # on the VPU (each term is (HIDDEN,1)*(1,TB) -> (HIDDEN,TB)).
    h = jnp.broadcast_to(b1_ref[...], (HIDDEN_SIZE, tb))
    for k in range(STATE_SIZE):
        h = h + w1_ref[k] * x[k:k + 1, :]
    h = jnp.maximum(h, 0.0)                               # ReLU

    # fc2: bias folded, unrolled K=16 FMA chain ((ACTION,1)*(1,TB) -> (ACTION,TB)).
    q = jnp.broadcast_to(b2_ref[...], (ACTION_SIZE, tb))
    for j in range(HIDDEN_SIZE):
        q = q + w2_ref[j] * h[j:j + 1, :]

    out_ref[...] = q.astype(out_ref.dtype)                # full-lane, unmasked store


def _round_up(n, m):
    return ((n + m - 1) // m) * m


@functools.partial(jax.jit, static_argnames=("block_b",))
def qnetwork_forward(x, w1, b1, w2, b2, block_b=1024):
    """Forward pass of QNetwork.

    x:  (B, STATE_SIZE) float32
    w1: (HIDDEN_SIZE, STATE_SIZE), b1: (HIDDEN_SIZE,)   -- PyTorch nn.Linear layout
    w2: (ACTION_SIZE, HIDDEN_SIZE), b2: (ACTION_SIZE,)
    Returns (B, ACTION_SIZE) float32.
    """
    batch = x.shape[0]

    # Batch tile: multiple of 128 lanes, capped at block_b.
    tb = min(block_b, _round_up(batch, 128))
    padded = _round_up(batch, tb)

    # Layout plumbing (outside the kernel, done once): batch on the lane axis,
    # zero-pad to a whole number of tiles, weights as per-feature columns.
    x_t = jnp.zeros((STATE_SIZE, padded), jnp.float32)
    x_t = x_t.at[:, :batch].set(x.astype(jnp.float32).T)
    w1c = jnp.transpose(w1).astype(jnp.float32)[:, :, None]   # (STATE, HIDDEN, 1)
    w2c = jnp.transpose(w2).astype(jnp.float32)[:, :, None]   # (HIDDEN, ACTION, 1)
    b1c = b1.astype(jnp.float32).reshape(HIDDEN_SIZE, 1)
    b2c = b2.astype(jnp.float32).reshape(ACTION_SIZE, 1)

    grid = (padded // tb,)
    q_t = pl.pallas_call(
        qnetwork_kernel,
        out_shape=jax.ShapeDtypeStruct((ACTION_SIZE, padded), jnp.float32),
        grid=grid,
        in_specs=[
            pl.BlockSpec((STATE_SIZE, tb), lambda i: (0, i)),
            pl.BlockSpec((STATE_SIZE, HIDDEN_SIZE, 1), lambda i: (0, 0, 0)),
            pl.BlockSpec((HIDDEN_SIZE, 1), lambda i: (0, 0)),
            pl.BlockSpec((HIDDEN_SIZE, ACTION_SIZE, 1), lambda i: (0, 0, 0)),
            pl.BlockSpec((ACTION_SIZE, 1), lambda i: (0, 0)),
        ],
        out_specs=pl.BlockSpec((ACTION_SIZE, tb), lambda i: (0, i)),
        compiler_params=pltpu.CompilerParams(
            # Batch tiles are independent: lets Mosaic shard them across both
            # TensorCores on v7x; harmless on single-TC v5e/v6e.
            dimension_semantics=("parallel",),
        ),
    )(x_t, w1c, b1c, w2c, b2c)

    # Drop lane padding, return in the PyTorch (B, ACTION_SIZE) convention.
    return q_t[:, :batch].T


def init_params(key):
    """PyTorch nn.Linear default init: U(-1/sqrt(fan_in), 1/sqrt(fan_in)).
    Weights kept in PyTorch (out_features, in_features) layout."""
    k1, k2, k3, k4 = jax.random.split(key, 4)
    bound1 = 1.0 / jnp.sqrt(jnp.float32(STATE_SIZE))
    bound2 = 1.0 / jnp.sqrt(jnp.float32(HIDDEN_SIZE))
    w1 = jax.random.uniform(k1, (HIDDEN_SIZE, STATE_SIZE), jnp.float32, -bound1, bound1)
    b1 = jax.random.uniform(k2, (HIDDEN_SIZE,), jnp.float32, -bound1, bound1)
    w2 = jax.random.uniform(k3, (ACTION_SIZE, HIDDEN_SIZE), jnp.float32, -bound2, bound2)
    b2 = jax.random.uniform(k4, (ACTION_SIZE,), jnp.float32, -bound2, bound2)
    return w1, b1, w2, b2


def reference_forward(x, w1, b1, w2, b2):
    h = jnp.maximum(x @ w1.T + b1, 0.0)
    return h @ w2.T + b2


if __name__ == "__main__":
    key = jax.random.PRNGKey(0)
    pkey, xkey1, xkey2 = jax.random.split(key, 3)
    w1, b1, w2, b2 = init_params(pkey)

    # Small batch (single padded 128-lane tile, grid=(1,)).
    x_small = jax.random.normal(xkey1, (8, STATE_SIZE), jnp.float32)
    q_small = jax.block_until_ready(qnetwork_forward(x_small, w1, b1, w2, b2))
    q_small_ref = reference_forward(x_small, w1, b1, w2, b2)
    assert q_small.shape == (8, ACTION_SIZE)
    assert jnp.allclose(q_small, q_small_ref, atol=1e-5, rtol=1e-5), "small-batch mismatch"

    # Larger batch with an explicit small tile: exercises multi-tile grid + padding.
    x_big = jax.random.normal(xkey2, (300, STATE_SIZE), jnp.float32)
    q_big = jax.block_until_ready(qnetwork_forward(x_big, w1, b1, w2, b2, block_b=128))
    q_big_ref = reference_forward(x_big, w1, b1, w2, b2)
    assert q_big.shape == (300, ACTION_SIZE)
    assert jnp.allclose(q_big, q_big_ref, atol=1e-5, rtol=1e-5), "big-batch mismatch"

    print("KERNEL_OK")
</pallas_src>

<mosaic_0001>
module attributes {stable_mosaic.version = 11 : i64} {
  func.func @qnetwork_kernel(%arg0: i32, %arg1: memref<4x128xf32, #tpu.memory_space<vmem>>, %arg2: memref<4x16x1xf32, #tpu.memory_space<vmem>>, %arg3: memref<16x1xf32, #tpu.memory_space<vmem>>, %arg4: memref<16x2x1xf32, #tpu.memory_space<vmem>>, %arg5: memref<2x1xf32, #tpu.memory_space<vmem>>, %arg6: memref<2x128xf32, #tpu.memory_space<vmem>>) attributes {dimension_semantics = [#tpu.dimension_semantics<parallel>], iteration_bounds = array<i64: 1>, scalar_prefetch = 0 : i64, scratch_operands = 0 : i64, tpu.core_type = #tpu.core_type<tc>, window_params = [{transform_indices = @transform_0, window_bounds = array<i64: 4, 128>}, {pipeline_mode = #tpu.pipeline_mode<synchronous>, transform_indices = @transform_1, window_bounds = array<i64: 4, 16, 1>}, {pipeline_mode = #tpu.pipeline_mode<synchronous>, transform_indices = @transform_2, window_bounds = array<i64: 16, 1>}, {pipeline_mode = #tpu.pipeline_mode<synchronous>, transform_indices = @transform_3, window_bounds = array<i64: 16, 2, 1>}, {pipeline_mode = #tpu.pipeline_mode<synchronous>, transform_indices = @transform_4, window_bounds = array<i64: 2, 1>}, {transform_indices = @transform_5, window_bounds = array<i64: 2, 128>}]} {
    %c0 = arith.constant 0 : index
    %c0_0 = arith.constant 0 : index
    %0 = vector.load %arg1[%c0, %c0_0] : memref<4x128xf32, #tpu.memory_space<vmem>>, vector<4x128xf32>
    %c0_1 = arith.constant 0 : index
    %c0_2 = arith.constant 0 : index
    %1 = vector.load %arg3[%c0_1, %c0_2] : memref<16x1xf32, #tpu.memory_space<vmem>>, vector<16x1xf32>
    %2 = vector.shape_cast %1 : vector<16x1xf32> to vector<16x1xf32>
    %3 = vector.broadcast %2 : vector<16x1xf32> to vector<16x128xf32>
    %c0_3 = arith.constant 0 : index
    %c0_4 = arith.constant 0 : index
    %c0_5 = arith.constant 0 : index
    %4 = vector.load %arg2[%c0_3, %c0_4, %c0_5] : memref<4x16x1xf32, #tpu.memory_space<vmem>>, vector<1x16x1xf32>
    %5 = vector.shape_cast %4 : vector<1x16x1xf32> to vector<16x1xf32>
    %6 = vector.extract_strided_slice %0 {offsets = [0, 0], sizes = [1, 128], strides = [1, 1]} : vector<4x128xf32> to vector<1x128xf32>
    %7 = vector.broadcast %5 : vector<16x1xf32> to vector<16x128xf32>
    %8 = vector.broadcast %6 : vector<1x128xf32> to vector<16x128xf32>
    %9 = arith.mulf %7, %8 : vector<16x128xf32>
    %10 = arith.addf %3, %9 : vector<16x128xf32>
    %c1 = arith.constant 1 : index
    %c0_6 = arith.constant 0 : index
    %c0_7 = arith.constant 0 : index
    %11 = vector.load %arg2[%c1, %c0_6, %c0_7] : memref<4x16x1xf32, #tpu.memory_space<vmem>>, vector<1x16x1xf32>
    %12 = vector.shape_cast %11 : vector<1x16x1xf32> to vector<16x1xf32>
    %13 = vector.extract_strided_slice %0 {offsets = [1, 0], sizes = [1, 128], strides = [1, 1]} : vector<4x128xf32> to vector<1x128xf32>
    %14 = vector.broadcast %12 : vector<16x1xf32> to vector<16x128xf32>
    %15 = vector.broadcast %13 : vector<1x128xf32> to vector<16x128xf32>
    %16 = arith.mulf %14, %15 : vector<16x128xf32>
    %17 = arith.addf %10, %16 : vector<16x128xf32>
    %c2 = arith.constant 2 : index
    %c0_8 = arith.constant 0 : index
    %c0_9 = arith.constant 0 : index
    %18 = vector.load %arg2[%c2, %c0_8, %c0_9] : memref<4x16x1xf32, #tpu.memory_space<vmem>>, vector<1x16x1xf32>
    %19 = vector.shape_cast %18 : vector<1x16x1xf32> to vector<16x1xf32>
    %20 = vector.extract_strided_slice %0 {offsets = [2, 0], sizes = [1, 128], strides = [1, 1]} : vector<4x128xf32> to vector<1x128xf32>
    %21 = vector.broadcast %19 : vector<16x1xf32> to vector<16x128xf32>
    %22 = vector.broadcast %20 : vector<1x128xf32> to vector<16x128xf32>
    %23 = arith.mulf %21, %22 : vector<16x128xf32>
    %24 = arith.addf %17, %23 : vector<16x128xf32>
    %c3 = arith.constant 3 : index
    %c0_10 = arith.constant 0 : index
    %c0_11 = arith.constant 0 : index
    %25 = vector.load %arg2[%c3, %c0_10, %c0_11] : memref<4x16x1xf32, #tpu.memory_space<vmem>>, vector<1x16x1xf32>
    %26 = vector.shape_cast %25 : vector<1x16x1xf32> to vector<16x1xf32>
    %27 = vector.extract_strided_slice %0 {offsets = [3, 0], sizes = [1, 128], strides = [1, 1]} : vector<4x128xf32> to vector<1x128xf32>
    %28 = vector.broadcast %26 : vector<16x1xf32> to vector<16x128xf32>
    %29 = vector.broadcast %27 : vector<1x128xf32> to vector<16x128xf32>
    %30 = arith.mulf %28, %29 : vector<16x128xf32>
    %31 = arith.addf %24, %30 : vector<16x128xf32>
    %cst = arith.constant 0.000000e+00 : f32
    %32 = vector.broadcast %cst : f32 to vector<16x128xf32>
    %33 = arith.maximumf %31, %32 : vector<16x128xf32>
    %c0_12 = arith.constant 0 : index
    %c0_13 = arith.constant 0 : index
    %34 = vector.load %arg5[%c0_12, %c0_13] : memref<2x1xf32, #tpu.memory_space<vmem>>, vector<2x1xf32>
    %35 = vector.shape_cast %34 : vector<2x1xf32> to vector<2x1xf32>
    %36 = vector.broadcast %35 : vector<2x1xf32> to vector<2x128xf32>
    %c0_14 = arith.constant 0 : index
    %c0_15 = arith.constant 0 : index
    %c0_16 = arith.constant 0 : index
    %37 = vector.load %arg4[%c0_14, %c0_15, %c0_16] : memref<16x2x1xf32, #tpu.memory_space<vmem>>, vector<1x2x1xf32>
    %38 = vector.shape_cast %37 : vector<1x2x1xf32> to vector<2x1xf32>
    %39 = vector.extract_strided_slice %33 {offsets = [0, 0], sizes = [1, 128], strides = [1, 1]} : vector<16x128xf32> to vector<1x128xf32>
    %40 = vector.broadcast %38 : vector<2x1xf32> to vector<2x128xf32>
    %41 = vector.broadcast %39 : vector<1x128xf32> to vector<2x128xf32>
    %42 = arith.mulf %40, %41 : vector<2x128xf32>
    %43 = arith.addf %36, %42 : vector<2x128xf32>
    %c1_17 = arith.constant 1 : index
    %c0_18 = arith.constant 0 : index
    %c0_19 = arith.constant 0 : index
    %44 = vector.load %arg4[%c1_17, %c0_18, %c0_19] : memref<16x2x1xf32, #tpu.memory_space<vmem>>, vector<1x2x1xf32>
    %45 = vector.shape_cast %44 : vector<1x2x1xf32> to vector<2x1xf32>
    %46 = vector.extract_strided_slice %33 {offsets = [1, 0], sizes = [1, 128], strides = [1, 1]} : vector<16x128xf32> to vector<1x128xf32>
    %47 = vector.broadcast %45 : vector<2x1xf32> to vector<2x128xf32>
    %48 = vector.broadcast %46 : vector<1x128xf32> to vector<2x128xf32>
    %49 = arith.mulf %47, %48 : vector<2x128xf32>
    %50 = arith.addf %43, %49 : vector<2x128xf32>
    %c2_20 = arith.constant 2 : index
    %c0_21 = arith.constant 0 : index
    %c0_22 = arith.constant 0 : index
    %51 = vector.load %arg4[%c2_20, %c0_21, %c0_22] : memref<16x2x1xf32, #tpu.memory_space<vmem>>, vector<1x2x1xf32>
    %52 = vector.shape_cast %51 : vector<1x2x1xf32> to vector<2x1xf32>
    %53 = vector.extract_strided_slice %33 {offsets = [2, 0], sizes = [1, 128], strides = [1, 1]} : vector<16x128xf32> to vector<1x128xf32>
    %54 = vector.broadcast %52 : vector<2x1xf32> to vector<2x128xf32>
    %55 = vector.broadcast %53 : vector<1x128xf32> to vector<2x128xf32>
    %56 = arith.mulf %54, %55 : vector<2x128xf32>
    %57 = arith.addf %50, %56 : vector<2x128xf32>
    %c3_23 = arith.constant 3 : index
    %c0_24 = arith.constant 0 : index
    %c0_25 = arith.constant 0 : index
    %58 = vector.load %arg4[%c3_23, %c0_24, %c0_25] : memref<16x2x1xf32, #tpu.memory_space<vmem>>, vector<1x2x1xf32>
    %59 = vector.shape_cast %58 : vector<1x2x1xf32> to vector<2x1xf32>
    %60 = vector.extract_strided_slice %33 {offsets = [3, 0], sizes = [1, 128], strides = [1, 1]} : vector<16x128xf32> to vector<1x128xf32>
    %61 = vector.broadcast %59 : vector<2x1xf32> to vector<2x128xf32>
    %62 = vector.broadcast %60 : vector<1x128xf32> to vector<2x128xf32>
    %63 = arith.mulf %61, %62 : vector<2x128xf32>
    %64 = arith.addf %57, %63 : vector<2x128xf32>
    %c4 = arith.constant 4 : index
    %c0_26 = arith.constant 0 : index
    %c0_27 = arith.constant 0 : index
    %65 = vector.load %arg4[%c4, %c0_26, %c0_27] : memref<16x2x1xf32, #tpu.memory_space<vmem>>, vector<1x2x1xf32>
    %66 = vector.shape_cast %65 : vector<1x2x1xf32> to vector<2x1xf32>
    %67 = vector.extract_strided_slice %33 {offsets = [4, 0], sizes = [1, 128], strides = [1, 1]} : vector<16x128xf32> to vector<1x128xf32>
    %68 = vector.broadcast %66 : vector<2x1xf32> to vector<2x128xf32>
    %69 = vector.broadcast %67 : vector<1x128xf32> to vector<2x128xf32>
    %70 = arith.mulf %68, %69 : vector<2x128xf32>
    %71 = arith.addf %64, %70 : vector<2x128xf32>
    %c5 = arith.constant 5 : index
    %c0_28 = arith.constant 0 : index
    %c0_29 = arith.constant 0 : index
    %72 = vector.load %arg4[%c5, %c0_28, %c0_29] : memref<16x2x1xf32, #tpu.memory_space<vmem>>, vector<1x2x1xf32>
    %73 = vector.shape_cast %72 : vector<1x2x1xf32> to vector<2x1xf32>
    %74 = vector.extract_strided_slice %33 {offsets = [5, 0], sizes = [1, 128], strides = [1, 1]} : vector<16x128xf32> to vector<1x128xf32>
    %75 = vector.broadcast %73 : vector<2x1xf32> to vector<2x128xf32>
    %76 = vector.broadcast %74 : vector<1x128xf32> to vector<2x128xf32>
    %77 = arith.mulf %75, %76 : vector<2x128xf32>
    %78 = arith.addf %71, %77 : vector<2x128xf32>
    %c6 = arith.constant 6 : index
    %c0_30 = arith.constant 0 : index
    %c0_31 = arith.constant 0 : index
    %79 = vector.load %arg4[%c6, %c0_30, %c0_31] : memref<16x2x1xf32, #tpu.memory_space<vmem>>, vector<1x2x1xf32>
    %80 = vector.shape_cast %79 : vector<1x2x1xf32> to vector<2x1xf32>
    %81 = vector.extract_strided_slice %33 {offsets = [6, 0], sizes = [1, 128], strides = [1, 1]} : vector<16x128xf32> to vector<1x128xf32>
    %82 = vector.broadcast %80 : vector<2x1xf32> to vector<2x128xf32>
    %83 = vector.broadcast %81 : vector<1x128xf32> to vector<2x128xf32>
    %84 = arith.mulf %82, %83 : vector<2x128xf32>
    %85 = arith.addf %78, %84 : vector<2x128xf32>
    %c7 = arith.constant 7 : index
    %c0_32 = arith.constant 0 : index
    %c0_33 = arith.constant 0 : index
    %86 = vector.load %arg4[%c7, %c0_32, %c0_33] : memref<16x2x1xf32, #tpu.memory_space<vmem>>, vector<1x2x1xf32>
    %87 = vector.shape_cast %86 : vector<1x2x1xf32> to vector<2x1xf32>
    %88 = vector.extract_strided_slice %33 {offsets = [7, 0], sizes = [1, 128], strides = [1, 1]} : vector<16x128xf32> to vector<1x128xf32>
    %89 = vector.broadcast %87 : vector<2x1xf32> to vector<2x128xf32>
    %90 = vector.broadcast %88 : vector<1x128xf32> to vector<2x128xf32>
    %91 = arith.mulf %89, %90 : vector<2x128xf32>
    %92 = arith.addf %85, %91 : vector<2x128xf32>
    %c8 = arith.constant 8 : index
    %c0_34 = arith.constant 0 : index
    %c0_35 = arith.constant 0 : index
    %93 = vector.load %arg4[%c8, %c0_34, %c0_35] : memref<16x2x1xf32, #tpu.memory_space<vmem>>, vector<1x2x1xf32>
    %94 = vector.shape_cast %93 : vector<1x2x1xf32> to vector<2x1xf32>
    %95 = vector.extract_strided_slice %33 {offsets = [8, 0], sizes = [1, 128], strides = [1, 1]} : vector<16x128xf32> to vector<1x128xf32>
    %96 = vector.broadcast %94 : vector<2x1xf32> to vector<2x128xf32>
    %97 = vector.broadcast %95 : vector<1x128xf32> to vector<2x128xf32>
    %98 = arith.mulf %96, %97 : vector<2x128xf32>
    %99 = arith.addf %92, %98 : vector<2x128xf32>
    %c9 = arith.constant 9 : index
    %c0_36 = arith.constant 0 : index
    %c0_37 = arith.constant 0 : index
    %100 = vector.load %arg4[%c9, %c0_36, %c0_37] : memref<16x2x1xf32, #tpu.memory_space<vmem>>, vector<1x2x1xf32>
    %101 = vector.shape_cast %100 : vector<1x2x1xf32> to vector<2x1xf32>
    %102 = vector.extract_strided_slice %33 {offsets = [9, 0], sizes = [1, 128], strides = [1, 1]} : vector<16x128xf32> to vector<1x128xf32>
    %103 = vector.broadcast %101 : vector<2x1xf32> to vector<2x128xf32>
    %104 = vector.broadcast %102 : vector<1x128xf32> to vector<2x128xf32>
    %105 = arith.mulf %103, %104 : vector<2x128xf32>
    %106 = arith.addf %99, %105 : vector<2x128xf32>
    %c10 = arith.constant 10 : index
    %c0_38 = arith.constant 0 : index
    %c0_39 = arith.constant 0 : index
    %107 = vector.load %arg4[%c10, %c0_38, %c0_39] : memref<16x2x1xf32, #tpu.memory_space<vmem>>, vector<1x2x1xf32>
    %108 = vector.shape_cast %107 : vector<1x2x1xf32> to vector<2x1xf32>
    %109 = vector.extract_strided_slice %33 {offsets = [10, 0], sizes = [1, 128], strides = [1, 1]} : vector<16x128xf32> to vector<1x128xf32>
    %110 = vector.broadcast %108 : vector<2x1xf32> to vector<2x128xf32>
    %111 = vector.broadcast %109 : vector<1x128xf32> to vector<2x128xf32>
    %112 = arith.mulf %110, %111 : vector<2x128xf32>
    %113 = arith.addf %106, %112 : vector<2x128xf32>
    %c11 = arith.constant 11 : index
    %c0_40 = arith.constant 0 : index
    %c0_41 = arith.constant 0 : index
    %114 = vector.load %arg4[%c11, %c0_40, %c0_41] : memref<16x2x1xf32, #tpu.memory_space<vmem>>, vector<1x2x1xf32>
    %115 = vector.shape_cast %114 : vector<1x2x1xf32> to vector<2x1xf32>
    %116 = vector.extract_strided_slice %33 {offsets = [11, 0], sizes = [1, 128], strides = [1, 1]} : vector<16x128xf32> to vector<1x128xf32>
    %117 = vector.broadcast %115 : vector<2x1xf32> to vector<2x128xf32>
    %118 = vector.broadcast %116 : vector<1x128xf32> to vector<2x128xf32>
    %119 = arith.mulf %117, %118 : vector<2x128xf32>
    %120 = arith.addf %113, %119 : vector<2x128xf32>
    %c12 = arith.constant 12 : index
    %c0_42 = arith.constant 0 : index
    %c0_43 = arith.constant 0 : index
    %121 = vector.load %arg4[%c12, %c0_42, %c0_43] : memref<16x2x1xf32, #tpu.memory_space<vmem>>, vector<1x2x1xf32>
    %122 = vector.shape_cast %121 : vector<1x2x1xf32> to vector<2x1xf32>
    %123 = vector.extract_strided_slice %33 {offsets = [12, 0], sizes = [1, 128], strides = [1, 1]} : vector<16x128xf32> to vector<1x128xf32>
    %124 = vector.broadcast %122 : vector<2x1xf32> to vector<2x128xf32>
    %125 = vector.broadcast %123 : vector<1x128xf32> to vector<2x128xf32>
    %126 = arith.mulf %124, %125 : vector<2x128xf32>
    %127 = arith.addf %120, %126 : vector<2x128xf32>
    %c13 = arith.constant 13 : index
    %c0_44 = arith.constant 0 : index
    %c0_45 = arith.constant 0 : index
    %128 = vector.load %arg4[%c13, %c0_44, %c0_45] : memref<16x2x1xf32, #tpu.memory_space<vmem>>, vector<1x2x1xf32>
    %129 = vector.shape_cast %128 : vector<1x2x1xf32> to vector<2x1xf32>
    %130 = vector.extract_strided_slice %33 {offsets = [13, 0], sizes = [1, 128], strides = [1, 1]} : vector<16x128xf32> to vector<1x128xf32>
    %131 = vector.broadcast %129 : vector<2x1xf32> to vector<2x128xf32>
    %132 = vector.broadcast %130 : vector<1x128xf32> to vector<2x128xf32>
    %133 = arith.mulf %131, %132 : vector<2x128xf32>
    %134 = arith.addf %127, %133 : vector<2x128xf32>
    %c14 = arith.constant 14 : index
    %c0_46 = arith.constant 0 : index
    %c0_47 = arith.constant 0 : index
    %135 = vector.load %arg4[%c14, %c0_46, %c0_47] : memref<16x2x1xf32, #tpu.memory_space<vmem>>, vector<1x2x1xf32>
    %136 = vector.shape_cast %135 : vector<1x2x1xf32> to vector<2x1xf32>
    %137 = vector.extract_strided_slice %33 {offsets = [14, 0], sizes = [1, 128], strides = [1, 1]} : vector<16x128xf32> to vector<1x128xf32>
    %138 = vector.broadcast %136 : vector<2x1xf32> to vector<2x128xf32>
    %139 = vector.broadcast %137 : vector<1x128xf32> to vector<2x128xf32>
    %140 = arith.mulf %138, %139 : vector<2x128xf32>
    %141 = arith.addf %134, %140 : vector<2x128xf32>
    %c15 = arith.constant 15 : index
    %c0_48 = arith.constant 0 : index
    %c0_49 = arith.constant 0 : index
    %142 = vector.load %arg4[%c15, %c0_48, %c0_49] : memref<16x2x1xf32, #tpu.memory_space<vmem>>, vector<1x2x1xf32>
    %143 = vector.shape_cast %142 : vector<1x2x1xf32> to vector<2x1xf32>
    %144 = vector.extract_strided_slice %33 {offsets = [15, 0], sizes = [1, 128], strides = [1, 1]} : vector<16x128xf32> to vector<1x128xf32>
    %145 = vector.broadcast %143 : vector<2x1xf32> to vector<2x128xf32>
    %146 = vector.broadcast %144 : vector<1x128xf32> to vector<2x128xf32>
    %147 = arith.mulf %145, %146 : vector<2x128xf32>
    %148 = arith.addf %141, %147 : vector<2x128xf32>
    %c0_50 = arith.constant 0 : index
    %c0_51 = arith.constant 0 : index
    %149 = vector.load %arg6[%c0_50, %c0_51] : memref<2x128xf32, #tpu.memory_space<vmem>>, vector<2x128xf32>
    tpu.vector_store %arg6[%c0_50, %c0_51], %148 {strides = array<i32>} : memref<2x128xf32, #tpu.memory_space<vmem>>, vector<2x128xf32>,
    return
  }
  func.func @transform_0(%arg0: i32) -> (i32, i32) {
    %c0_i32 = arith.constant 0 : i32
    %c0_i32_0 = arith.constant 0 : i32
    return %c0_i32, %arg0 : i32, i32
  }
  func.func @transform_1(%arg0: i32) -> (i32, i32, i32) {
    %c0_i32 = arith.constant 0 : i32
    %c0_i32_0 = arith.constant 0 : i32
    %c0_i32_1 = arith.constant 0 : i32
    %c0_i32_2 = arith.constant 0 : i32
    return %c0_i32, %c0_i32_0, %c0_i32_1 : i32, i32, i32
  }
  func.func @transform_2(%arg0: i32) -> (i32, i32) {
    %c0_i32 = arith.constant 0 : i32
    %c0_i32_0 = arith.constant 0 : i32
    %c0_i32_1 = arith.constant 0 : i32
    return %c0_i32, %c0_i32_0 : i32, i32
  }
  func.func @transform_3(%arg0: i32) -> (i32, i32, i32) {
    %c0_i32 = arith.constant 0 : i32
    %c0_i32_0 = arith.constant 0 : i32
    %c0_i32_1 = arith.constant 0 : i32
    %c0_i32_2 = arith.constant 0 : i32
    return %c0_i32, %c0_i32_0, %c0_i32_1 : i32, i32, i32
  }
  func.func @transform_4(%arg0: i32) -> (i32, i32) {
    %c0_i32 = arith.constant 0 : i32
    %c0_i32_0 = arith.constant 0 : i32
    %c0_i32_1 = arith.constant 0 : i32
    return %c0_i32, %c0_i32_0 : i32, i32
  }
  func.func @transform_5(%arg0: i32) -> (i32, i32) {
    %c0_i32 = arith.constant 0 : i32
    %c0_i32_0 = arith.constant 0 : i32
    return %c0_i32, %arg0 : i32, i32
  }
}

</mosaic_0001>

<llo_original>
// kernel: qnetwork_forward.1
$region0: #{qnetwork_forward.1}
  #allocation0 [shape = 'u32[]', space=smem, size = 0x4, offset = 0x4, fixed_abs, tag = 'smem constant byte address 0x4 - core index']
  #allocation1 [shape = 'u32[144,128]{1,0:T(1,128)}', space=vmem, size = 0x12000, scoped, tag = 'internal scratch']
  %s0 = inlined_call_operand.vmem [shape: f32[4,128], index: 0, kind: input, shape index: {}]
  %s1 = inlined_call_operand.vmem [shape: f32[4,16,1], index: 1, kind: input, shape index: {}]
  %s2 = inlined_call_operand.vmem [shape: f32[16,1], index: 2, kind: input, shape index: {}]
  %s3 = inlined_call_operand.vmem [shape: f32[16,2,1], index: 3, kind: input, shape index: {}]
  %s4 = inlined_call_operand.vmem [shape: f32[2,1], index: 4, kind: input, shape index: {}]
  %s5 = inlined_call_operand.vmem [shape: f32[2,128], index: 5, kind: output, shape index: {}]
  %s6 = sld [smem:[#allocation0]]
  $region30: #{qnetwork_forward.1} parent=0
    _
  %s8 = ssub.s32 1, %s6
  %s9 = scalar_select 0, %s8, %s6
  // Predicated region
  $region2: #{qnetwork_forward.1} parent=0 // pred_check
    _
  $region3: #{qnetwork_forward.1} parent=0 // pred_check_branch
    %11 = sbr.rel (0) target = $region5
  $region4: #{qnetwork_forward.1} parent=0 // pred_region
    _
  $region5: #{qnetwork_forward.1} parent=0 // pred_fallthru
    _
  // Predicated region
  $region6: #{qnetwork_forward.1} parent=0 // pred_check
    _
  $region7: #{qnetwork_forward.1} parent=0 // pred_check_branch
    %13 = sbr.rel (0) target = $region9
  $region8: #{qnetwork_forward.1} parent=0 // pred_region
    _
  $region9: #{qnetwork_forward.1} parent=0 // pred_fallthru
    _
  // Predicated region
  $region10: #{qnetwork_forward.1} parent=0 // pred_check
    _
  $region11: #{qnetwork_forward.1} parent=0 // pred_check_branch
    %15 = sbr.rel (0) target = $region13
  $region12: #{qnetwork_forward.1} parent=0 // pred_region
    _
  $region13: #{qnetwork_forward.1} parent=0 // pred_fallthru
    _
  // Predicated region
  $region14: #{qnetwork_forward.1} parent=0 // pred_check
    _
  $region15: #{qnetwork_forward.1} parent=0 // pred_check_branch
    %17 = sbr.rel (0) target = $region17
  $region16: #{qnetwork_forward.1} parent=0 // pred_region
    _
  $region17: #{qnetwork_forward.1} parent=0 // pred_fallthru
    _
  // Predicated region
  $region18: #{qnetwork_forward.1} parent=0 // pred_check
    _
  $region19: #{qnetwork_forward.1} parent=0 // pred_check_branch
    %19 = sbr.rel (0) target = $region21
  $region20: #{qnetwork_forward.1} parent=0 // pred_region
    _
  $region21: #{qnetwork_forward.1} parent=0 // pred_fallthru
    _
  %v20 = vld [vmem:[%s0] sm:$0xf]
  %v21 = vld [vmem:[%s2] sm:$0xff]
  %v22 = vld [vmem:[%s2 + $0x8] sm:$0xff]
  %24 = vset.pattern.permute.xlu0 0
  %25 = vperm.xlu0 %24, %v21
  %v26 = vpop.permute.xlu0 %25
  %29 = vset.pattern.permute.xlu0 0
  %30 = vperm.xlu0 %29, %v22
  %v31 = vpop.permute.xlu0 %30
  %v33 = vld [vmem:[%s1] sm:$0xff]
  %v34 = vld [vmem:[%s1 + $0x8] sm:$0xff]
  %36 = vset.pattern.permute.xlu0 0
  %37 = vperm.xlu0 %36, %v33
  %v38 = vpop.permute.xlu0 %37
  %41 = vset.pattern.permute.xlu0 0
  %42 = vperm.xlu0 %41, %v34
  %v43 = vpop.permute.xlu0 %42
  %v45 = vlaneseq
  %v46 = vshrl.u32 %v45, 7
  %v47 = vsub.s32 0, %v46
  %v48 = vrot.slane %v20, %v47
  %v49 = vmul.f32 %v38, %v48
  %v50 = vmul.f32 %v43, %v48
  %v51 = vadd.f32 %v26, %v49
  %v52 = vadd.f32 %v31, %v50
  %s53 = scalar_lea.vmem %s1, 16
  %v54 = vld [vmem:[%s53] sm:$0xff]
  %v55 = vld [vmem:[%s53 + $0x8] sm:$0xff]
  %57 = vset.pattern.permute.xlu0 0
  %58 = vperm.xlu0 %57, %v54
  %v59 = vpop.permute.xlu0 %58
  %62 = vset.pattern.permute.xlu0 0
  %63 = vperm.xlu0 %62, %v55
  %v64 = vpop.permute.xlu0 %63
  %v66 = vlaneseq
  %v67 = vshrl.u32 %v66, 7
  %v68 = vsub.s32 1, %v67
  %v69 = vrot.slane %v20, %v68
  %v70 = vmul.f32 %v59, %v69
  %v71 = vmul.f32 %v64, %v69
  %v72 = vadd.f32 %v51, %v70
  %v73 = vadd.f32 %v52, %v71
  %s74 = scalar_lea.vmem %s1, 32
  %v75 = vld [vmem:[%s74] sm:$0xff]
  %v76 = vld [vmem:[%s74 + $0x8] sm:$0xff]
  %78 = vset.pattern.permute.xlu0 0
  %79 = vperm.xlu0 %78, %v75
  %v80 = vpop.permute.xlu0 %79
  %83 = vset.pattern.permute.xlu0 0
  %84 = vperm.xlu0 %83, %v76
  %v85 = vpop.permute.xlu0 %84
  %v87 = vlaneseq
  %v88 = vshrl.u32 %v87, 7
  %v89 = vsub.s32 2, %v88
  %v90 = vrot.slane %v20, %v89
  %v91 = vmul.f32 %v80, %v90
  %v92 = vmul.f32 %v85, %v90
  %v93 = vadd.f32 %v72, %v91
  %v94 = vadd.f32 %v73, %v92
  %s95 = scalar_lea.vmem %s1, 48
  %v96 = vld [vmem:[%s95] sm:$0xff]
  %v97 = vld [vmem:[%s95 + $0x8] sm:$0xff]
  %99 = vset.pattern.permute.xlu0 0
  %100 = vperm.xlu0 %99, %v96
  %v101 = vpop.permute.xlu0 %100
  %104 = vset.pattern.permute.xlu0 0
  %105 = vperm.xlu0 %104, %v97
  %v106 = vpop.permute.xlu0 %105
  %v108 = vlaneseq
  %v109 = vshrl.u32 %v108, 7
  %v110 = vsub.s32 3, %v109
  %v111 = vrot.slane %v20, %v110
  %v112 = vmul.f32 %v101, %v111
  %v113 = vmul.f32 %v106, %v111
  %v114 = vadd.f32 %v93, %v112
  %v115 = vadd.f32 %v94, %v113
  %v116 = vmax.f32 %v114, 0.0
  %v117 = vmax.f32 %v115, 0.0
  %v118 = vld [vmem:[%s4] sm:$0x3]
  %120 = vset.pattern.permute.xlu0 0
  %121 = vperm.xlu0 %120, %v118
  %v122 = vpop.permute.xlu0 %121
  %v124 = vld [vmem:[%s3] sm:$0x3]
  %126 = vset.pattern.permute.xlu0 0
  %127 = vperm.xlu0 %126, %v124
  %v128 = vpop.permute.xlu0 %127
  %v130 = vlaneseq
  %v131 = vshrl.u32 %v130, 7
  %v132 = vsub.s32 0, %v131
  %v133 = vrot.slane %v116, %v132
  %v134 = vmul.f32 %v128, %v133
  %v135 = vadd.f32 %v122, %v134
  %s136 = scalar_lea.vmem %s3, 2
  %v137 = vld [vmem:[%s136] sm:$0x3]
  %139 = vset.pattern.permute.xlu0 0
  %140 = vperm.xlu0 %139, %v137
  %v141 = vpop.permute.xlu0 %140
  %v143 = vlaneseq
  %v144 = vshrl.u32 %v143, 7
  %v145 = vsub.s32 1, %v144
  %v146 = vrot.slane %v116, %v145
  %v147 = vmul.f32 %v141, %v146
  %v148 = vadd.f32 %v135, %v147
  %s149 = scalar_lea.vmem %s3, 4
  %v150 = vld [vmem:[%s149] sm:$0x3]
  %152 = vset.pattern.permute.xlu0 0
  %153 = vperm.xlu0 %152, %v150
  %v154 = vpop.permute.xlu0 %153
  %v156 = vlaneseq
  %v157 = vshrl.u32 %v156, 7
  %v158 = vsub.s32 2, %v157
  %v159 = vrot.slane %v116, %v158
  %v160 = vmul.f32 %v154, %v159
  %v161 = vadd.f32 %v148, %v160
  %s162 = scalar_lea.vmem %s3, 6
  %v163 = vld [vmem:[%s162] sm:$0x3]
  %165 = vset.pattern.permute.xlu0 0
  %166 = vperm.xlu0 %165, %v163
  %v167 = vpop.permute.xlu0 %166
  %v169 = vlaneseq
  %v170 = vshrl.u32 %v169, 7
  %v171 = vsub.s32 3, %v170
  %v172 = vrot.slane %v116, %v171
  %v173 = vmul.f32 %v167, %v172
  %v174 = vadd.f32 %v161, %v173
  %s175 = scalar_lea.vmem %s3, 8
  %v176 = vld [vmem:[%s175] sm:$0x3]
  %178 = vset.pattern.permute.xlu0 0
  %179 = vperm.xlu0 %178, %v176
  %v180 = vpop.permute.xlu0 %179
  %v182 = vlaneseq
  %v183 = vshrl.u32 %v182, 7
  %v184 = vsub.s32 4, %v183
  %v185 = vrot.slane %v116, %v184
  %v186 = vmul.f32 %v180, %v185
  %v187 = vadd.f32 %v174, %v186
  %s188 = scalar_lea.vmem %s3, 10
  %v189 = vld [vmem:[%s188] sm:$0x3]
  %191 = vset.pattern.permute.xlu0 0
  %192 = vperm.xlu0 %191, %v189
  %v193 = vpop.permute.xlu0 %192
  %v195 = vlaneseq
  %v196 = vshrl.u32 %v195, 7
  %v197 = vsub.s32 5, %v196
  %v198 = vrot.slane %v116, %v197
  %v199 = vmul.f32 %v193, %v198
  %v200 = vadd.f32 %v187, %v199
  %s201 = scalar_lea.vmem %s3, 12
  %v202 = vld [vmem:[%s201] sm:$0x3]
  %204 = vset.pattern.permute.xlu0 0
  %205 = vperm.xlu0 %204, %v202
  %v206 = vpop.permute.xlu0 %205
  %v208 = vlaneseq
  %v209 = vshrl.u32 %v208, 7
  %v210 = vsub.s32 6, %v209
  %v211 = vrot.slane %v116, %v210
  %v212 = vmul.f32 %v206, %v211
  %v213 = vadd.f32 %v200, %v212
  %s214 = scalar_lea.vmem %s3, 14
  %v215 = vld [vmem:[%s214] sm:$0x3]
  %217 = vset.pattern.permute.xlu0 0
  %218 = vperm.xlu0 %217, %v215
  %v219 = vpop.permute.xlu0 %218
  %v221 = vlaneseq
  %v222 = vshrl.u32 %v221, 7
  %v223 = vsub.s32 7, %v222
  %v224 = vrot.slane %v116, %v223
  %v225 = vmul.f32 %v219, %v224
  %v226 = vadd.f32 %v213, %v225
  %s227 = scalar_lea.vmem %s3, 16
  %v228 = vld [vmem:[%s227] sm:$0x3]
  %230 = vset.pattern.permute.xlu0 0
  %231 = vperm.xlu0 %230, %v228
  %v232 = vpop.permute.xlu0 %231
  %v234 = vlaneseq
  %v235 = vshrl.u32 %v234, 7
  %v236 = vsub.s32 0, %v235
  %v237 = vrot.slane %v117, %v236
  %v238 = vmul.f32 %v232, %v237
  %v239 = vadd.f32 %v226, %v238
  %s240 = scalar_lea.vmem %s3, 18
  %v241 = vld [vmem:[%s240] sm:$0x3]
  %243 = vset.pattern.permute.xlu0 0
  %244 = vperm.xlu0 %243, %v241
  %v245 = vpop.permute.xlu0 %244
  %v247 = vlaneseq
  %v248 = vshrl.u32 %v247, 7
  %v249 = vsub.s32 1, %v248
  %v250 = vrot.slane %v117, %v249
  %v251 = vmul.f32 %v245, %v250
  %v252 = vadd.f32 %v239, %v251
  %s253 = scalar_lea.vmem %s3, 20
  %v254 = vld [vmem:[%s253] sm:$0x3]
  %256 = vset.pattern.permute.xlu0 0
  %257 = vperm.xlu0 %256, %v254
  %v258 = vpop.permute.xlu0 %257
  %v260 = vlaneseq
  %v261 = vshrl.u32 %v260, 7
  %v262 = vsub.s32 2, %v261
  %v263 = vrot.slane %v117, %v262
  %v264 = vmul.f32 %v258, %v263
  %v265 = vadd.f32 %v252, %v264
  %s266 = scalar_lea.vmem %s3, 22
  %v267 = vld [vmem:[%s266] sm:$0x3]
  %269 = vset.pattern.permute.xlu0 0
  %270 = vperm.xlu0 %269, %v267
  %v271 = vpop.permute.xlu0 %270
  %v273 = vlaneseq
  %v274 = vshrl.u32 %v273, 7
  %v275 = vsub.s32 3, %v274
  %v276 = vrot.slane %v117, %v275
  %v277 = vmul.f32 %v271, %v276
  %v278 = vadd.f32 %v265, %v277
  %s279 = scalar_lea.vmem %s3, 24
  %v280 = vld [vmem:[%s279] sm:$0x3]
  %282 = vset.pattern.permute.xlu0 0
  %283 = vperm.xlu0 %282, %v280
  %v284 = vpop.permute.xlu0 %283
  %v286 = vlaneseq
  %v287 = vshrl.u32 %v286, 7
  %v288 = vsub.s32 4, %v287
  %v289 = vrot.slane %v117, %v288
  %v290 = vmul.f32 %v284, %v289
  %v291 = vadd.f32 %v278, %v290
  %s292 = scalar_lea.vmem %s3, 26
  %v293 = vld [vmem:[%s292] sm:$0x3]
  %295 = vset.pattern.permute.xlu0 0
  %296 = vperm.xlu0 %295, %v293
  %v297 = vpop.permute.xlu0 %296
  %v299 = vlaneseq
  %v300 = vshrl.u32 %v299, 7
  %v301 = vsub.s32 5, %v300
  %v302 = vrot.slane %v117, %v301
  %v303 = vmul.f32 %v297, %v302
  %v304 = vadd.f32 %v291, %v303
  %s305 = scalar_lea.vmem %s3, 28
  %v306 = vld [vmem:[%s305] sm:$0x3]
  %308 = vset.pattern.permute.xlu0 0
  %309 = vperm.xlu0 %308, %v306
  %v310 = vpop.permute.xlu0 %309
  %v312 = vlaneseq
  %v313 = vshrl.u32 %v312, 7
  %v314 = vsub.s32 6, %v313
  %v315 = vrot.slane %v117, %v314
  %v316 = vmul.f32 %v310, %v315
  %v317 = vadd.f32 %v304, %v316
  %s318 = scalar_lea.vmem %s3, 30
  %v319 = vld [vmem:[%s318] sm:$0x3]
  %321 = vset.pattern.permute.xlu0 0
  %322 = vperm.xlu0 %321, %v319
  %v323 = vpop.permute.xlu0 %322
  %v325 = vlaneseq
  %v326 = vshrl.u32 %v325, 7
  %v327 = vsub.s32 7, %v326
  %v328 = vrot.slane %v117, %v327
  %v329 = vmul.f32 %v323, %v328
  %v330 = vadd.f32 %v317, %v329
  %331 = vst [vmem:[%s5] sm:$0x3] %v330
  // Predicated region
  $region22: #{qnetwork_forward.1} parent=0 // pred_check
    _
  $region23: #{qnetwork_forward.1} parent=0 // pred_check_branch
    %333 = sbr.rel (0) target = $region25
  $region24: #{qnetwork_forward.1} parent=0 // pred_region
    _
  $region25: #{qnetwork_forward.1} parent=0 // pred_fallthru
    _
  // Predicated region
  $region26: #{qnetwork_forward.1} parent=0 // pred_check
    _
  $region27: #{qnetwork_forward.1} parent=0 // pred_check_branch
    %335 = sbr.rel (0) target = $region29
  $region28: #{qnetwork_forward.1} parent=0 // pred_region
    _
  $region29: #{qnetwork_forward.1} parent=0 // pred_fallthru
    _

</llo_original>
